<compile_context>
chip_gen: v7x
topology: tpu7x:2x2x1
jax: 0.10.0
libtpu: 0.0.40
codegen_flags: <defaults>
</compile_context>

<pallas_src>
import numpy as np
import jax
import jax.numpy as jnp
from jax.experimental import pallas as pl
from jax.experimental.pallas import tpu as pltpu

HIDDEN = 512                        # fixed by the module
TM_CAP = 2048                       # max rows per M tile
TK_FALLBACK = 2048                  # K tile when W1 does not fit in VMEM
VMEM_BUDGET = 40 * 1024 * 1024      # conservative tile budget (v7x-safe)
VMEM_LIMIT = 48 * 1024 * 1024       # scoped VMEM limit (< 64 MiB v7x physical)
W1_RESIDENT_LIMIT = 24 * 1024 * 1024  # 2x bf16 W1 must fit to skip K tiling


def _round_up(x, m):
    return (x + m - 1) // m * m


# ----------------------------------------------------------------------------
# Kernels
# ----------------------------------------------------------------------------
def _critic_kernel_single(x_ref, w1_ref, b1_ref, w2_ref, b2_ref, o_ref):
    """out = relu(x @ W1 + b1) . w2 + b2 with the whole K axis in one tile."""
    # GEMM1 on the MXU: bf16 operands (cast in-kernel), f32 accumulation.
    h = jnp.dot(x_ref[...].astype(jnp.bfloat16), w1_ref[...],
                preferred_element_type=jnp.float32)
    h = jnp.maximum(h + b1_ref[...], 0.0)
    # Layer 2 (512 -> 1): VPU multiply + XLU lane reduction (f32), 1-lane store.
    o_ref[...] = (jnp.sum(h * w2_ref[...], axis=-1, keepdims=True)
                  + b2_ref[...]).astype(o_ref.dtype)


def _critic_kernel_ktiled(x_ref, w1_ref, b1_ref, w2_ref, b2_ref, o_ref, h_acc):
    """Fallback for very large latent sizes: K is tiled and accumulated."""
    k = pl.program_id(1)

    @pl.when(k == 0)
    def _():
        h_acc[...] = jnp.zeros_like(h_acc)

    h_acc[...] += jnp.dot(x_ref[...].astype(jnp.bfloat16), w1_ref[...],
                          preferred_element_type=jnp.float32)

    @pl.when(k == pl.num_programs(1) - 1)
    def _():
        h = jnp.maximum(h_acc[...] + b1_ref[...], 0.0)
        o_ref[...] = (jnp.sum(h * w2_ref[...], axis=-1, keepdims=True)
                      + b2_ref[...]).astype(o_ref.dtype)


# ----------------------------------------------------------------------------
# Tiling heuristics
# ----------------------------------------------------------------------------
def _select_tk(K):
    """tk == K (no K grid axis) whenever double-buffered bf16 W1 fits in VMEM."""
    if 2 * K * HIDDEN * 2 <= W1_RESIDENT_LIMIT:
        return K, K, False
    return TK_FALLBACK, _round_up(K, TK_FALLBACK), True


def _select_tm(B, tk, ktiled):
    Bp = _round_up(max(B, 1), 8)
    # per-row VMEM: double-buffered f32 x tile + f32 hidden temporaries (+acc)
    row_bytes = 2 * tk * 4 + 3 * HIDDEN * 4 + 64
    if ktiled:
        row_bytes += HIDDEN * 4
    fixed = 2 * tk * HIDDEN * 2 + 4 * HIDDEN * 4
    avail = max(VMEM_BUDGET - fixed, 1 << 20)
    tm = min(TM_CAP, max((avail // row_bytes) // 8 * 8, 8))
    if Bp >= 256:                       # >=2 M tiles so both v7x TCs get work
        tm = min(tm, _round_up(pl.cdiv(Bp, 2), 8))
    tm = min(tm, Bp)
    n_tiles = pl.cdiv(Bp, tm)
    tm = _round_up(pl.cdiv(Bp, n_tiles), 8)   # balance tiles -> minimal M pad
    return tm, n_tiles * tm


# ----------------------------------------------------------------------------
# One-time parameter preparation (hoisted off the per-step hot path)
# ----------------------------------------------------------------------------
def prepare_params(params):
    K = params["w1"].shape[0]
    _, Kp, ktiled = _select_tk(K)
    w1 = params["w1"].astype(jnp.bfloat16)                  # (K, 512) bf16
    if ktiled and Kp != K:
        w1 = jnp.zeros((Kp, HIDDEN), jnp.bfloat16).at[:K].set(w1)
    return {
        "w1": w1,
        "b1": params["b1"].reshape(1, HIDDEN).astype(jnp.float32),
        "w2": params["w2"].reshape(1, HIDDEN).astype(jnp.float32),  # f32 row
        "b2": params["b2"].reshape(1, 1).astype(jnp.float32),
    }


# ----------------------------------------------------------------------------
# Forward: jitted, per-call work is essentially just the Pallas kernel
# ----------------------------------------------------------------------------
@jax.jit
def basic_critic_forward(prep, x):
    """x: [B, latent] float32 -> [B, 1] float32 critic value."""
    B, K = x.shape
    tk, Kp, ktiled = _select_tk(K)
    tm, Mp = _select_tm(B, tk, ktiled)

    pad_m, pad_k = Mp - B, Kp - K
    if pad_m or pad_k:
        x = jnp.pad(x, ((0, pad_m), (0, pad_k)))   # x stays f32 in HBM

    w1, b1, w2, b2 = prep["w1"], prep["b1"], prep["w2"], prep["b2"]

    if not ktiled:
        out = pl.pallas_call(
            _critic_kernel_single,
            out_shape=jax.ShapeDtypeStruct((Mp, 1), jnp.float32),
            grid_spec=pltpu.PrefetchScalarGridSpec(
                num_scalar_prefetch=0,
                grid=(Mp // tm,),
                in_specs=[
                    pl.BlockSpec((tm, K), lambda i: (i, 0)),       # x tile (f32)
                    pl.BlockSpec((K, HIDDEN), lambda i: (0, 0)),   # W1 resident
                    pl.BlockSpec((1, HIDDEN), lambda i: (0, 0)),   # b1
                    pl.BlockSpec((1, HIDDEN), lambda i: (0, 0)),   # w2 row
                    pl.BlockSpec((1, 1), lambda i: (0, 0)),        # b2
                ],
                out_specs=pl.BlockSpec((tm, 1), lambda i: (i, 0)),
            ),
            compiler_params=pltpu.CompilerParams(
                dimension_semantics=("parallel",),
                vmem_limit_bytes=VMEM_LIMIT,
            ),
        )(x, w1, b1, w2, b2)
    else:
        out = pl.pallas_call(
            _critic_kernel_ktiled,
            out_shape=jax.ShapeDtypeStruct((Mp, 1), jnp.float32),
            grid_spec=pltpu.PrefetchScalarGridSpec(
                num_scalar_prefetch=0,
                grid=(Mp // tm, Kp // tk),
                in_specs=[
                    pl.BlockSpec((tm, tk), lambda i, k: (i, k)),
                    pl.BlockSpec((tk, HIDDEN), lambda i, k: (k, 0)),
                    pl.BlockSpec((1, HIDDEN), lambda i, k: (0, 0)),
                    pl.BlockSpec((1, HIDDEN), lambda i, k: (0, 0)),
                    pl.BlockSpec((1, 1), lambda i, k: (0, 0)),
                ],
                out_specs=pl.BlockSpec((tm, 1), lambda i, k: (i, 0)),
                scratch_shapes=[pltpu.VMEM((tm, HIDDEN), jnp.float32)],
            ),
            compiler_params=pltpu.CompilerParams(
                dimension_semantics=("parallel", "arbitrary"),
                vmem_limit_bytes=VMEM_LIMIT,
            ),
        )(x, w1, b1, w2, b2)

    return out[:B, :]


# ----------------------------------------------------------------------------
# Parameter init matching torch layer_init: orthogonal(std=sqrt(2)), bias=0
# ----------------------------------------------------------------------------
def init_params(key, latent_size):
    k1, k2 = jax.random.split(key)
    ortho = jax.nn.initializers.orthogonal(scale=np.sqrt(2))
    # torch Linear weight is [out, in]; store transposed [in, out] so forward
    # is x @ W (same math as x @ weight.T).
    w1 = ortho(k1, (HIDDEN, latent_size), jnp.float32).T
    w2 = ortho(k2, (1, HIDDEN), jnp.float32).T
    b1 = jnp.zeros((HIDDEN,), jnp.float32)
    b2 = jnp.zeros((1,), jnp.float32)
    return {"w1": w1, "b1": b1, "w2": w2, "b2": b2}


def _reference(params, x):
    # Same numerics as the kernel: bf16 MXU operands with f32 accumulation for
    # GEMM1, pure-f32 elementwise multiply+reduce for the 512->1 layer.
    h = jnp.dot(x.astype(jnp.bfloat16), params["w1"].astype(jnp.bfloat16),
                preferred_element_type=jnp.float32) + params["b1"]
    h = jnp.maximum(h, 0.0)
    w2_row = params["w2"].reshape(1, HIDDEN).astype(jnp.float32)
    return (jnp.sum(h * w2_row, axis=-1, keepdims=True)
            + params["b2"].reshape(1, 1))


if __name__ == "__main__":
    key = jax.random.PRNGKey(0)
    k_x, k_p, k_x2, k_p2 = jax.random.split(key, 4)

    # Small shape consistent with the module (single M tile, tk == K path).
    B, latent = 2, 32
    x = jax.random.normal(k_x, (B, latent), jnp.float32)
    params = init_params(k_p, latent)
    prep = prepare_params(params)

    out = jax.block_until_ready(basic_critic_forward(prep, x))
    ref = _reference(params, x)
    assert out.shape == (B, 1), out.shape
    assert out.dtype == jnp.float32
    assert bool(jnp.all(jnp.isfinite(out)))
    assert bool(jnp.allclose(out, ref, rtol=1e-3, atol=1e-3)), (out, ref)

    # Second shape exercising the multi-M-tile / ragged-batch path.
    B2, latent2 = 260, 192
    x2 = jax.random.normal(k_x2, (B2, latent2), jnp.float32)
    params2 = init_params(k_p2, latent2)
    prep2 = prepare_params(params2)
    out2 = jax.block_until_ready(basic_critic_forward(prep2, x2))
    ref2 = _reference(params2, x2)
    assert out2.shape == (B2, 1), out2.shape
    assert bool(jnp.all(jnp.isfinite(out2)))
    assert bool(jnp.allclose(out2, ref2, rtol=1e-3, atol=1e-3))

    print("KERNEL_OK")
</pallas_src>

<mosaic_0001>
module attributes {stable_mosaic.version = 11 : i64} {
  func.func @_critic_kernel_single(%arg0: i32, %arg1: memref<8x32xf32, #tpu.memory_space<vmem>>, %arg2: memref<32x512xbf16, #tpu.memory_space<vmem>>, %arg3: memref<1x512xf32, #tpu.memory_space<vmem>>, %arg4: memref<1x512xf32, #tpu.memory_space<vmem>>, %arg5: memref<1x1xf32, #tpu.memory_space<vmem>>, %arg6: memref<8x1xf32, #tpu.memory_space<vmem>>) attributes {dimension_semantics = [#tpu.dimension_semantics<parallel>], iteration_bounds = array<i64: 1>, scalar_prefetch = 0 : i64, scratch_operands = 0 : i64, tpu.core_type = #tpu.core_type<tc>, window_params = [{transform_indices = @transform_0, window_bounds = array<i64: 8, 32>}, {pipeline_mode = #tpu.pipeline_mode<synchronous>, transform_indices = @transform_1, window_bounds = array<i64: 32, 512>}, {pipeline_mode = #tpu.pipeline_mode<synchronous>, transform_indices = @transform_2, window_bounds = array<i64: 1, 512>}, {pipeline_mode = #tpu.pipeline_mode<synchronous>, transform_indices = @transform_3, window_bounds = array<i64: 1, 512>}, {pipeline_mode = #tpu.pipeline_mode<synchronous>, transform_indices = @transform_4, window_bounds = array<i64: 1, 1>}, {transform_indices = @transform_5, window_bounds = array<i64: 8, 1>}]} {
    %c0 = arith.constant 0 : index
    %c0_0 = arith.constant 0 : index
    %0 = vector.load %arg1[%c0, %c0_0] : memref<8x32xf32, #tpu.memory_space<vmem>>, vector<8x32xf32>
    %1 = arith.truncf %0 : vector<8x32xf32> to vector<8x32xbf16>
    %c0_1 = arith.constant 0 : index
    %c0_2 = arith.constant 0 : index
    %2 = vector.load %arg2[%c0_1, %c0_2] : memref<32x512xbf16, #tpu.memory_space<vmem>>, vector<32x512xbf16>
    %cst = arith.constant dense<0.000000e+00> : vector<8x512xf32>
    %3 = tpu.matmul %1, %2, %cst {dimension_numbers = #tpu.dot_dimension_numbers<[1], [0], [0], [1], [0, 0, 1, 1], [], []>} : vector<8x32xbf16>, vector<32x512xbf16>, vector<8x512xf32> -> vector<8x512xf32>
    %c0_3 = arith.constant 0 : index
    %c0_4 = arith.constant 0 : index
    %4 = vector.load %arg3[%c0_3, %c0_4] : memref<1x512xf32, #tpu.memory_space<vmem>>, vector<1x512xf32>
    %5 = vector.broadcast %4 : vector<1x512xf32> to vector<8x512xf32>
    %6 = arith.addf %3, %5 : vector<8x512xf32>
    %cst_5 = arith.constant 0.000000e+00 : f32
    %7 = vector.broadcast %cst_5 : f32 to vector<8x512xf32>
    %8 = arith.maximumf %6, %7 : vector<8x512xf32>
    %c0_6 = arith.constant 0 : index
    %c0_7 = arith.constant 0 : index
    %9 = vector.load %arg4[%c0_6, %c0_7] : memref<1x512xf32, #tpu.memory_space<vmem>>, vector<1x512xf32>
    %10 = vector.broadcast %9 : vector<1x512xf32> to vector<8x512xf32>
    %11 = arith.mulf %8, %10 : vector<8x512xf32>
    %cst_8 = arith.constant dense<0.000000e+00> : vector<8xf32>
    %12 = vector.multi_reduction <add>, %11, %cst_8 [1] : vector<8x512xf32> to vector<8xf32>
    %13 = vector.shape_cast %12 : vector<8xf32> to vector<8x1xf32>
    %c0_9 = arith.constant 0 : index
    %c0_10 = arith.constant 0 : index
    %14 = vector.load %arg5[%c0_9, %c0_10] : memref<1x1xf32, #tpu.memory_space<vmem>>, vector<1x1xf32>
    %15 = vector.broadcast %14 : vector<1x1xf32> to vector<8x1xf32>
    %16 = arith.addf %13, %15 : vector<8x1xf32>
    %c0_11 = arith.constant 0 : index
    %c0_12 = arith.constant 0 : index
    %17 = vector.load %arg6[%c0_11, %c0_12] : memref<8x1xf32, #tpu.memory_space<vmem>>, vector<8x1xf32>
    tpu.vector_store %arg6[%c0_11, %c0_12], %16 {strides = array<i32>} : memref<8x1xf32, #tpu.memory_space<vmem>>, vector<8x1xf32>,
    return
  }
  func.func @transform_0(%arg0: i32) -> (i32, i32) {
    %c0_i32 = arith.constant 0 : i32
    %c0_i32_0 = arith.constant 0 : i32
    return %arg0, %c0_i32 : i32, i32
  }
  func.func @transform_1(%arg0: i32) -> (i32, i32) {
    %c0_i32 = arith.constant 0 : i32
    %c0_i32_0 = arith.constant 0 : i32
    %c0_i32_1 = arith.constant 0 : i32
    return %c0_i32, %c0_i32_0 : i32, i32
  }
  func.func @transform_2(%arg0: i32) -> (i32, i32) {
    %c0_i32 = arith.constant 0 : i32
    %c0_i32_0 = arith.constant 0 : i32
    %c0_i32_1 = arith.constant 0 : i32
    return %c0_i32, %c0_i32_0 : i32, i32
  }
  func.func @transform_3(%arg0: i32) -> (i32, i32) {
    %c0_i32 = arith.constant 0 : i32
    %c0_i32_0 = arith.constant 0 : i32
    %c0_i32_1 = arith.constant 0 : i32
    return %c0_i32, %c0_i32_0 : i32, i32
  }
  func.func @transform_4(%arg0: i32) -> (i32, i32) {
    %c0_i32 = arith.constant 0 : i32
    %c0_i32_0 = arith.constant 0 : i32
    %c0_i32_1 = arith.constant 0 : i32
    return %c0_i32, %c0_i32_0 : i32, i32
  }
  func.func @transform_5(%arg0: i32) -> (i32, i32) {
    %c0_i32 = arith.constant 0 : i32
    %c0_i32_0 = arith.constant 0 : i32
    return %arg0, %c0_i32 : i32, i32
  }
}

</mosaic_0001>

<llo_original>
// kernel: basic_critic_forward.1
$region0: #{basic_critic_forward.1}
  #allocation0 [shape = 'u32[]', space=smem, size = 0x4, offset = 0x4, fixed_abs, tag = 'smem constant byte address 0x4 - core index']
  #allocation1 [shape = 'u32[144,128]{1,0:T(1,128)}', space=vmem, size = 0x12000, scoped, tag = 'internal scratch']
  #allocation2 [shape = 'f32[1,1]{1,0:T(1,128)S(1)}', space=vmem, size = 0x200, scoped, tag = 'scoped memory for basic_critic_forward.1']
  %s0 = inlined_call_operand.vmem [shape: f32[8,32], index: 0, kind: input, shape index: {}]
  %s1 = inlined_call_operand.hbm [shape: bf16[32,512], index: 1, kind: input, shape index: {}]
  %s2 = inlined_call_operand.vmem [shape: f32[1,512], index: 2, kind: input, shape index: {}]
  %s3 = inlined_call_operand.vmem [shape: f32[1,512], index: 3, kind: input, shape index: {}]
  %s4 = inlined_call_operand.<no memory space> [shape: f32[1,1], index: 4, kind: input, shape index: {}]
  %s5 = inlined_call_operand.vmem [shape: f32[8,1], index: 5, kind: output, shape index: {}]
  %s6 = sld [smem:[#allocation0]]
  $region34: #{basic_critic_forward.1} parent=0
    _
  %s8 = ssub.s32 1, %s6
  %s9 = scalar_select 0, %s8, %s6
  %v10 = vstv %s4
  %11 = vst [vmem:[#allocation2] sm:$0x1] %v10
  $region1: #{basic_critic_forward.1} parent=0
    #allocation3 [shape = 'u8[32768]{0}', space=vmem, size = 0x8000, scoped, tag = 'input window, operand 1, single buffered']
    #allocation4 [shape = 's32[1]{0}', space=sflag, size = 0x4, scoped, tag = 'scoped memory for basic_critic_forward.1']
    %12 = vsyncpa [#allocation4], 0
    // Predicated region
    $region2: #{basic_critic_forward.1} parent=1 // pred_check
      _
    $region3: #{basic_critic_forward.1} parent=1 // pred_check_branch
      %14 = sbr.rel (0) target = $region5
    $region4: #{basic_critic_forward.1} parent=1 // pred_region
      _
    $region5: #{basic_critic_forward.1} parent=1 // pred_fallthru
      _
    // Predicated region
    $region6: #{basic_critic_forward.1} parent=1 // pred_check
      _
    $region7: #{basic_critic_forward.1} parent=1 // pred_check_branch
      %16 = sbr.rel (0) target = $region9
    $region8: #{basic_critic_forward.1} parent=1 // pred_region
      %s18 = ssub.s32 1024, 1024
      %19 = vsyncadd [#allocation4], %s18
      %s20 = sshll.u32 [#allocation3], 4
      %s21 = int_to_ptr.vmem [resolvable:$true] %s20
      %26 = dma.hbm_to_vmem [thread:$0]  %s1, 1024, %s21, [#allocation4], 256, 256, 16
    $region9: #{basic_critic_forward.1} parent=1 // pred_fallthru
      _
    // Predicated region
    $region10: #{basic_critic_forward.1} parent=1 // pred_check
      _
    $region11: #{basic_critic_forward.1} parent=1 // pred_check_branch
      %28 = sbr.rel (0) target = $region13
    $region12: #{basic_critic_forward.1} parent=1 // pred_region
      _
    $region13: #{basic_critic_forward.1} parent=1 // pred_fallthru
      _
    // Predicated region
    $region14: #{basic_critic_forward.1} parent=1 // pred_check
      _
    $region15: #{basic_critic_forward.1} parent=1 // pred_check_branch
      %30 = sbr.rel (0) target = $region17
    $region16: #{basic_critic_forward.1} parent=1 // pred_region
      _
    $region17: #{basic_critic_forward.1} parent=1 // pred_fallthru
      _
    // Predicated region
    $region18: #{basic_critic_forward.1} parent=1 // pred_check
      _
    $region19: #{basic_critic_forward.1} parent=1 // pred_check_branch
      %32 = sbr.rel (0) target = $region21
    $region20: #{basic_critic_forward.1} parent=1 // pred_region
      _
    $region21: #{basic_critic_forward.1} parent=1 // pred_fallthru
      _
    // Predicated region
    $region22: #{basic_critic_forward.1} parent=1 // pred_check
      _
    $region23: #{basic_critic_forward.1} parent=1 // pred_check_branch
      %34 = sbr.rel (0) target = $region25
    $region24: #{basic_critic_forward.1} parent=1 // pred_region
      %35 = dma.done [#allocation4], 1024
    $region25: #{basic_critic_forward.1} parent=1 // pred_fallthru
      _
    %v37 = vld [vmem:[%s0] sm:$0xff]
    %v38 = vpack.c.bf16 %v37, %v37
    %v39 = vld [vmem:[#allocation3] sm:$0xff]
    %v40 = vld [vmem:[#allocation3 + $0x8] sm:$0xff]
    %v41 = vld [vmem:[#allocation3 + $0x10] sm:$0xff]
    %v42 = vld [vmem:[#allocation3 + $0x18] sm:$0xff]
    %v43 = vld [vmem:[#allocation3 + $0x20] sm:$0xff]
    %v44 = vld [vmem:[#allocation3 + $0x28] sm:$0xff]
    %v45 = vld [vmem:[#allocation3 + $0x30] sm:$0xff]
    %v46 = vld [vmem:[#allocation3 + $0x38] sm:$0xff]
    %v47 = vld [vmem:[%s2] sm:$0xf]
    %v49 = vlaneseq
    %v50 = vshrl.u32 %v49, 7
    %v51 = vsub.s32 0, %v50
    %v52 = vrot.slane %v47, %v51
    %v53 = vlaneseq
    %v54 = vshrl.u32 %v53, 7
    %v55 = vsub.s32 1, %v54
    %v56 = vrot.slane %v47, %v55
    %v57 = vlaneseq
    %v58 = vshrl.u32 %v57, 7
    %v59 = vsub.s32 2, %v58
    %v60 = vrot.slane %v47, %v59
    %v61 = vlaneseq
    %v62 = vshrl.u32 %v61, 7
    %v63 = vsub.s32 3, %v62
    %v64 = vrot.slane %v47, %v63
    %v77 = vunpack.c.l.b16 %v39
    %v78 = vunpack.c.h.b16 %v39
    %v79 = vunpack.c.l.b16 %v40
    %v80 = vunpack.c.h.b16 %v40
    %v81 = vunpack.c.l.b16 %v41
    %v82 = vunpack.c.h.b16 %v41
    %v83 = vunpack.c.l.b16 %v42
    %v84 = vunpack.c.h.b16 %v42
    %v85 = vunpack.c.l.b16 %v43
    %v86 = vunpack.c.h.b16 %v43
    %v87 = vunpack.c.l.b16 %v44
    %v88 = vunpack.c.h.b16 %v44
    %v89 = vunpack.c.l.b16 %v45
    %v90 = vunpack.c.h.b16 %v45
    %v91 = vunpack.c.l.b16 %v46
    %v92 = vunpack.c.h.b16 %v46
    %v93 = vpack.c.b16 %v81, %v77
    %v94 = vpack.c.b16 %v82, %v78
    %v95 = vpack.c.b16 %v83, %v79
    %v96 = vpack.c.b16 %v84, %v80
    %v97 = vpack.c.b16 %v89, %v85
    %v98 = vpack.c.b16 %v90, %v86
    %v99 = vpack.c.b16 %v91, %v87
    %v100 = vpack.c.b16 %v92, %v88
    %vm109 = vcmask 261120
    %v111 = vsel %vm109, %v38, 0
    %113 = vmatprep.subr.bf16.mxu0 %v94
    %114 = vmatpush1.bf16.msra.mxu0 %v93
    %115 = vmatprep.subr.bf16.mxu0 %v98
    %116 = vmatpush1.bf16.msra.mxu0 %v97
    %117 = vmatprep.subr.bf16.mxu0 0
    %118 = vmatpush1.bf16.msra.mxu0 0
    %119 = vmatprep.subr.bf16.mxu0 0
    %120 = vmatpush1.bf16.msra.mxu0 0
    %121 = vmatprep.subr.bf16.mxu0 0
    %122 = vmatpush1.bf16.msra.mxu0 0
    %123 = vmatprep.subr.bf16.mxu0 0
    %124 = vmatpush1.bf16.msra.mxu0 0
    %125 = vmatprep.subr.bf16.mxu0 0
    %126 = vmatpush1.bf16.msra.mxu0 0
    %127 = vmatprep.subr.bf16.mxu0 0
    %128 = vmatpush1.bf16.msra.mxu0 0
    %129 = vmatprep.subr.bf16.mxu0 0
    %130 = vmatpush1.bf16.msra.mxu0 0
    %131 = vmatprep.subr.bf16.mxu0 0
    %132 = vmatpush1.bf16.msra.mxu0 0
    %133 = vmatprep.subr.bf16.mxu0 0
    %134 = vmatpush1.bf16.msra.mxu0 0
    %135 = vmatprep.subr.bf16.mxu0 0
    %136 = vmatpush1.bf16.msra.mxu0 0
    %137 = vmatprep.subr.bf16.mxu0 0
    %138 = vmatpush1.bf16.msra.mxu0 0
    %139 = vmatprep.subr.bf16.mxu0 0
    %140 = vmatpush1.bf16.msra.mxu0 0
    %141 = vmatprep.subr.bf16.mxu0 0
    %142 = vmatpush1.bf16.msra.mxu0 0
    %143 = vmatprep.subr.bf16.mxu0 0
    %144 = vmatpush1.bf16.msra.mxu0 0
    %145 = vmatprep.mubr.bf16.mxu0 0
    %146 = vmatmul.mubr.bf16.gmra.mrb[0].mxu0 %v111
    %v147 = vpop.f32.mrb[0].mxu0
    %v148 = vadd.f32 %v52, %v147
    %v149 = vpop.f32.mrb[0].mxu0
    %v150 = vadd.f32 %v56, %v149
    %v151 = vpop.f32.mrb[0].mxu0
    %v152 = vpop.f32.mrb[0].mxu0
    %153 = vdwg.mxu0
    %154 = vmatprep.subr.bf16.mxu0 %v96
    %155 = vmatpush1.bf16.msra.mxu0 %v95
    %156 = vmatprep.subr.bf16.mxu0 %v100
    %157 = vmatpush1.bf16.msra.mxu0 %v99
    %158 = vmatprep.subr.bf16.mxu0 0
    %159 = vmatpush1.bf16.msra.mxu0 0
    %160 = vmatprep.subr.bf16.mxu0 0
    %161 = vmatpush1.bf16.msra.mxu0 0
    %162 = vmatprep.subr.bf16.mxu0 0
    %163 = vmatpush1.bf16.msra.mxu0 0
    %164 = vmatprep.subr.bf16.mxu0 0
    %165 = vmatpush1.bf16.msra.mxu0 0
    %166 = vmatprep.subr.bf16.mxu0 0
    %167 = vmatpush1.bf16.msra.mxu0 0
    %168 = vmatprep.subr.bf16.mxu0 0
    %169 = vmatpush1.bf16.msra.mxu0 0
    %170 = vmatprep.subr.bf16.mxu0 0
    %171 = vmatpush1.bf16.msra.mxu0 0
    %172 = vmatprep.subr.bf16.mxu0 0
    %173 = vmatpush1.bf16.msra.mxu0 0
    %174 = vmatprep.subr.bf16.mxu0 0
    %175 = vmatpush1.bf16.msra.mxu0 0
    %176 = vmatprep.subr.bf16.mxu0 0
    %177 = vmatpush1.bf16.msra.mxu0 0
    %178 = vmatprep.subr.bf16.mxu0 0
    %179 = vmatpush1.bf16.msra.mxu0 0
    %180 = vmatprep.subr.bf16.mxu0 0
    %181 = vmatpush1.bf16.msra.mxu0 0
    %182 = vmatprep.subr.bf16.mxu0 0
    %183 = vmatpush1.bf16.msra.mxu0 0
    %184 = vmatprep.subr.bf16.mxu0 0
    %185 = vmatpush1.bf16.msra.mxu0 0
    %186 = vmatprep.mubr.bf16.mxu0 0
    %187 = vmatmul.mubr.bf16.gmra.mrb[0].mxu0 %v111
    %v188 = vpop.f32.mrb[0].mxu0
    %v189 = vadd.f32 %v60, %v188
    %v190 = vpop.f32.mrb[0].mxu0
    %v191 = vadd.f32 %v64, %v190
    %v192 = vpop.f32.mrb[0].mxu0
    %v193 = vpop.f32.mrb[0].mxu0
    %194 = vdwg.mxu0
    %v195 = vmax.f32 %v148, 0.0
    %v196 = vmax.f32 %v150, 0.0
    %v197 = vmax.f32 %v189, 0.0
    %v198 = vmax.f32 %v191, 0.0
    %v199 = vld [vmem:[%s3] sm:$0xf]
    %v201 = vlaneseq
    %v202 = vshrl.u32 %v201, 7
    %v203 = vsub.s32 0, %v202
    %v204 = vrot.slane %v199, %v203
    %v205 = vlaneseq
    %v206 = vshrl.u32 %v205, 7
    %v207 = vsub.s32 1, %v206
    %v208 = vrot.slane %v199, %v207
    %v209 = vlaneseq
    %v210 = vshrl.u32 %v209, 7
    %v211 = vsub.s32 2, %v210
    %v212 = vrot.slane %v199, %v211
    %v213 = vlaneseq
    %v214 = vshrl.u32 %v213, 7
    %v215 = vsub.s32 3, %v214
    %v216 = vrot.slane %v199, %v215
    %v221 = vmul.f32 %v195, %v204
    %v222 = vmul.f32 %v196, %v208
    %v223 = vmul.f32 %v197, %v212
    %v224 = vmul.f32 %v198, %v216
    %v225 = vadd.f32 %v221, %v222
    %v226 = vadd.f32 %v225, %v223
    %v227 = vadd.f32 %v226, %v224
    %228 = vadd.xlane.f32.xlu0 %v227
    %v229 = vpop.xlane.xlu0 %228
    %v230 = vld [vmem:[#allocation2] sm:$0x1]
    %v232 = vlaneseq
    %v233 = vshrl.u32 %v232, 7
    %v234 = vsub.s32 0, %v233
    %v235 = vrot.slane %v230, %v234
    %v237 = vadd.f32 %v229, %v235
    %vm238 = vcmask 7168
    %239 = vst.msk [vmem:[%s5] sm:$0xff] %vm238, %v237
    // Predicated region
    $region26: #{basic_critic_forward.1} parent=1 // pred_check
      _
    $region27: #{basic_critic_forward.1} parent=1 // pred_check_branch
      %241 = sbr.rel (0) target = $region29
    $region28: #{basic_critic_forward.1} parent=1 // pred_region
      _
    $region29: #{basic_critic_forward.1} parent=1 // pred_fallthru
      _
    // Predicated region
    $region30: #{basic_critic_forward.1} parent=1 // pred_check
      _
    $region31: #{basic_critic_forward.1} parent=1 // pred_check_branch
      %243 = sbr.rel (0) target = $region33
    $region32: #{basic_critic_forward.1} parent=1 // pred_region
      _
    $region33: #{basic_critic_forward.1} parent=1 // pred_fallthru
      _
    %244 = vsyncpa [#allocation4], 1

</llo_original>
